<compile_context>
chip_gen: v7x
topology: tpu7x:2x2x1
jax: 0.10.0
libtpu: 0.0.40
codegen_flags: <defaults>
</compile_context>

<pallas_src>
import functools

import jax
import jax.numpy as jnp
from jax.experimental import pallas as pl
from jax.experimental.pallas import tpu as pltpu


def _verb_pose_kernel(*refs, n_pose, has_obj):
    """refs layout (inputs..., out):
       for each active pose feature: (x, w1_linear_rows, w1_log_rows)
       if has_obj:                   (obj, w1_obj_rows)
       then:                         b1_adj, w2, b2, out_ref
    """
    refs = list(refs)
    out_ref = refs.pop()
    b2_ref = refs.pop()
    w2_ref = refs.pop()
    b1_ref = refs.pop()
    if has_obj:
        w_obj_ref = refs.pop()
        obj_ref = refs.pop()

    tb = out_ref.shape[0]
    hidden = b1_ref.shape[1]

    # --- first layer: sum of partial dots over static w1 row-slices ---
    h = None

    def _acc(h, term):
        return term if h is None else h + term

    for p in range(n_pose):
        x_ref = refs[3 * p]
        w_lin_ref = refs[3 * p + 1]
        w_log_ref = refs[3 * p + 2]
        x = x_ref[...]
        h = _acc(h, jnp.dot(x, w_lin_ref[...], preferred_element_type=jnp.float32))
        h = _acc(h, jnp.dot(jnp.log(jnp.abs(x) + 1e-6), w_log_ref[...],
                            preferred_element_type=jnp.float32))

    if has_obj:
        h = _acc(h, jnp.dot(obj_ref[...], w_obj_ref[...],
                            preferred_element_type=jnp.float32))

    if h is None:  # every feature disabled: constants already folded into b1
        h = jnp.zeros((tb, hidden), dtype=jnp.float32)

    # bias added exactly once after the summed partial dots
    h = h + b1_ref[...]
    h = jnp.maximum(h, 0.0)

    # --- second layer ---
    scores = jnp.dot(h, w2_ref[...], preferred_element_type=jnp.float32) + b2_ref[...]
    out_ref[...] = scores.astype(out_ref.dtype)


def verb_given_human_pose(feats, params, *,
                          use_absolute_pose=True,
                          use_relative_pose=True,
                          use_object_label=True,
                          batch_tile=512):
    """feats: 'absolute_pose' (B, Da), 'relative_pose' (B, Dr), 'object_one_hot' (B, Do).
    params: w1 (2*(Da+Dr)+Do, H), b1 (1, H), w2 (H, V), b2 (1, V)."""
    ap = feats['absolute_pose']
    rp = feats['relative_pose']
    obj = feats['object_one_hot']
    w1, b1, w2, b2 = params['w1'], params['b1'], params['w2'], params['b2']

    B = ap.shape[0]
    Da, Dr, Do = ap.shape[1], rp.shape[1], obj.shape[1]
    H = w1.shape[1]
    V = w2.shape[1]

    # Static row-slices of w1 matching the reference concat order:
    #   in_feat = [ap, rp, log|ap|, log|rp|, obj]
    w1_ap_lin = w1[0:Da]
    w1_rp_lin = w1[Da:Da + Dr]
    w1_ap_log = w1[Da + Dr:2 * Da + Dr]
    w1_rp_log = w1[2 * Da + Dr:2 * Da + 2 * Dr]
    w1_obj = w1[2 * Da + 2 * Dr:2 * Da + 2 * Dr + Do]

    # Fold the constant contribution of disabled pose features into b1:
    # a zeroed pose block contributes log(|0| + 1e-6) through its log rows.
    log_eps = jnp.float32(jnp.log(1e-6))
    b1_adj = b1.astype(jnp.float32)
    if not use_absolute_pose:
        b1_adj = b1_adj + log_eps * jnp.sum(w1_ap_log, axis=0, keepdims=True)
    if not use_relative_pose:
        b1_adj = b1_adj + log_eps * jnp.sum(w1_rp_log, axis=0, keepdims=True)
    # disabled object label contributes exactly zero -> simply not passed.

    # Batch tiling: keep tile moderate so double-buffered activation tiles +
    # resident weights fit comfortably in v7x's 64 MiB VMEM as well.
    TB = min(batch_tile, B)
    grid = (pl.cdiv(B, TB),)

    def act_spec(d):
        return pl.BlockSpec((TB, d), lambda i: (i, 0))

    def resident_spec(a):  # full array, stays VMEM-resident across the grid
        shp = a.shape
        return pl.BlockSpec(shp, lambda i: tuple(0 for _ in shp))

    inputs = []
    in_specs = []
    n_pose = 0
    if use_absolute_pose:
        inputs += [ap, w1_ap_lin, w1_ap_log]
        in_specs += [act_spec(Da), resident_spec(w1_ap_lin), resident_spec(w1_ap_log)]
        n_pose += 1
    if use_relative_pose:
        inputs += [rp, w1_rp_lin, w1_rp_log]
        in_specs += [act_spec(Dr), resident_spec(w1_rp_lin), resident_spec(w1_rp_log)]
        n_pose += 1
    if use_object_label:
        inputs += [obj, w1_obj]
        in_specs += [act_spec(Do), resident_spec(w1_obj)]

    inputs += [b1_adj, w2, b2]
    in_specs += [resident_spec(b1_adj), resident_spec(w2), resident_spec(b2)]

    kernel = functools.partial(_verb_pose_kernel, n_pose=n_pose,
                               has_obj=bool(use_object_label))

    # Advisory cost hint so XLA can schedule neighbors around the custom call.
    k_active = (2 * (Da * int(use_absolute_pose) + Dr * int(use_relative_pose))
                + Do * int(use_object_label))
    flops = 2 * B * (k_active * H + H * V)
    transcendentals = B * (Da * int(use_absolute_pose) + Dr * int(use_relative_pose))
    bytes_accessed = sum(int(x.size) * x.dtype.itemsize for x in inputs) + B * V * 4
    cost = pl.CostEstimate(flops=flops, transcendentals=transcendentals,
                           bytes_accessed=bytes_accessed)

    return pl.pallas_call(
        kernel,
        out_shape=jax.ShapeDtypeStruct((B, V), jnp.float32),
        grid=grid,
        in_specs=in_specs,
        out_specs=pl.BlockSpec((TB, V), lambda i: (i, 0)),
        compiler_params=pltpu.CompilerParams(
            dimension_semantics=("parallel",)),
        cost_estimate=cost,
    )(*inputs)


def _reference(feats, params, *, use_absolute_pose, use_relative_pose, use_object_label):
    ap = feats['absolute_pose'] if use_absolute_pose else 0 * feats['absolute_pose']
    rp = feats['relative_pose'] if use_relative_pose else 0 * feats['relative_pose']
    obj = feats['object_one_hot'] if use_object_label else 0 * feats['object_one_hot']
    pose = jnp.concatenate([ap, rp], axis=1)
    tfeat = jnp.concatenate([pose, jnp.log(jnp.abs(pose) + 1e-6)], axis=1)
    in_feat = jnp.concatenate([tfeat, obj], axis=1)
    h = jnp.maximum(in_feat @ params['w1'] + params['b1'], 0.0)
    return h @ params['w2'] + params['b2']


if __name__ == "__main__":
    key = jax.random.PRNGKey(0)
    k_ap, k_rp, k_obj, k_w1, k_w2 = jax.random.split(key, 5)

    # Small synthetic shapes consistent with the module:
    B = 2            # batch
    Da = 8           # absolute_pose dim
    Dr = 8           # relative_pose dim
    Do = 16          # object one-hot dim
    Din = 2 * (Da + Dr) + Do   # = 48
    H = 32           # hidden units
    V = 16           # number of verb classes (factor scores)

    feats = {
        'absolute_pose': jax.random.normal(k_ap, (B, Da), dtype=jnp.float32),
        'relative_pose': jax.random.normal(k_rp, (B, Dr), dtype=jnp.float32),
        'object_one_hot': (jax.random.uniform(k_obj, (B, Do)) > 0.9).astype(jnp.float32),
    }

    # Deterministic synthetic MLP parameters (Linear -> ReLU -> Linear).
    # TODO(synk): original create_mlp config (layer count / BN / dropout) not
    # available here; a 2-layer ReLU MLP is used as the synthetic stand-in.
    params = {
        'w1': 0.1 * jax.random.normal(k_w1, (Din, H), dtype=jnp.float32),
        'b1': jnp.zeros((1, H), dtype=jnp.float32),
        'w2': 0.1 * jax.random.normal(k_w2, (H, V), dtype=jnp.float32),
        'b2': jnp.zeros((1, V), dtype=jnp.float32),
    }

    # Case 1: all features enabled.
    flags_all = dict(use_absolute_pose=True, use_relative_pose=True, use_object_label=True)
    out = jax.block_until_ready(verb_given_human_pose(feats, params, **flags_all))
    ref = _reference(feats, params, **flags_all)
    assert out.shape == (B, V)
    assert jnp.allclose(out, ref, atol=1e-4, rtol=1e-4), "mismatch vs reference (all enabled)"

    # Case 2: exercise the skip-DMA / fold-into-bias path for disabled features.
    flags_some = dict(use_absolute_pose=True, use_relative_pose=False, use_object_label=False)
    out2 = jax.block_until_ready(verb_given_human_pose(feats, params, **flags_some))
    ref2 = _reference(feats, params, **flags_some)
    assert jnp.allclose(out2, ref2, atol=1e-4, rtol=1e-4), "mismatch vs reference (partially disabled)"

    print("KERNEL_OK")
</pallas_src>

<mosaic_0001>
module attributes {stable_mosaic.version = 11 : i64} {
  func.func @_verb_pose_kernel(%arg0: i32, %arg1: memref<2x8xf32, #tpu.memory_space<vmem>>, %arg2: memref<8x32xf32, #tpu.memory_space<vmem>>, %arg3: memref<8x32xf32, #tpu.memory_space<vmem>>, %arg4: memref<2x8xf32, #tpu.memory_space<vmem>>, %arg5: memref<8x32xf32, #tpu.memory_space<vmem>>, %arg6: memref<8x32xf32, #tpu.memory_space<vmem>>, %arg7: memref<2x16xf32, #tpu.memory_space<vmem>>, %arg8: memref<16x32xf32, #tpu.memory_space<vmem>>, %arg9: memref<1x32xf32, #tpu.memory_space<vmem>>, %arg10: memref<32x16xf32, #tpu.memory_space<vmem>>, %arg11: memref<1x16xf32, #tpu.memory_space<vmem>>, %arg12: memref<2x16xf32, #tpu.memory_space<vmem>>) attributes {dimension_semantics = [#tpu.dimension_semantics<parallel>], iteration_bounds = array<i64: 1>, scalar_prefetch = 0 : i64, scratch_operands = 0 : i64, tpu.core_type = #tpu.core_type<tc>, window_params = [{transform_indices = @transform_0, window_bounds = array<i64: 2, 8>}, {pipeline_mode = #tpu.pipeline_mode<synchronous>, transform_indices = @transform_1, window_bounds = array<i64: 8, 32>}, {pipeline_mode = #tpu.pipeline_mode<synchronous>, transform_indices = @transform_2, window_bounds = array<i64: 8, 32>}, {transform_indices = @transform_3, window_bounds = array<i64: 2, 8>}, {pipeline_mode = #tpu.pipeline_mode<synchronous>, transform_indices = @transform_4, window_bounds = array<i64: 8, 32>}, {pipeline_mode = #tpu.pipeline_mode<synchronous>, transform_indices = @transform_5, window_bounds = array<i64: 8, 32>}, {transform_indices = @transform_6, window_bounds = array<i64: 2, 16>}, {pipeline_mode = #tpu.pipeline_mode<synchronous>, transform_indices = @transform_7, window_bounds = array<i64: 16, 32>}, {pipeline_mode = #tpu.pipeline_mode<synchronous>, transform_indices = @transform_8, window_bounds = array<i64: 1, 32>}, {pipeline_mode = #tpu.pipeline_mode<synchronous>, transform_indices = @transform_9, window_bounds = array<i64: 32, 16>}, {pipeline_mode = #tpu.pipeline_mode<synchronous>, transform_indices = @transform_10, window_bounds = array<i64: 1, 16>}, {transform_indices = @transform_11, window_bounds = array<i64: 2, 16>}]} {
    %c0 = arith.constant 0 : index
    %c0_0 = arith.constant 0 : index
    %0 = vector.load %arg1[%c0, %c0_0] : memref<2x8xf32, #tpu.memory_space<vmem>>, vector<2x8xf32>
    %c0_1 = arith.constant 0 : index
    %c0_2 = arith.constant 0 : index
    %1 = vector.load %arg2[%c0_1, %c0_2] : memref<8x32xf32, #tpu.memory_space<vmem>>, vector<8x32xf32>
    %cst = arith.constant dense<0.000000e+00> : vector<2x32xf32>
    %2 = tpu.matmul %0, %1, %cst {dimension_numbers = #tpu.dot_dimension_numbers<[1], [0], [0], [1], [0, 0, 1, 1], [], []>} : vector<2x8xf32>, vector<8x32xf32>, vector<2x32xf32> -> vector<2x32xf32>
    %3 = math.absf %0 : vector<2x8xf32>
    %cst_3 = arith.constant 9.99999997E-7 : f32
    %4 = vector.broadcast %cst_3 : f32 to vector<2x8xf32>
    %5 = arith.addf %3, %4 : vector<2x8xf32>
    %6 = math.log %5 : vector<2x8xf32>
    %c0_4 = arith.constant 0 : index
    %c0_5 = arith.constant 0 : index
    %7 = vector.load %arg3[%c0_4, %c0_5] : memref<8x32xf32, #tpu.memory_space<vmem>>, vector<8x32xf32>
    %cst_6 = arith.constant dense<0.000000e+00> : vector<2x32xf32>
    %8 = tpu.matmul %6, %7, %cst_6 {dimension_numbers = #tpu.dot_dimension_numbers<[1], [0], [0], [1], [0, 0, 1, 1], [], []>} : vector<2x8xf32>, vector<8x32xf32>, vector<2x32xf32> -> vector<2x32xf32>
    %9 = arith.addf %2, %8 : vector<2x32xf32>
    %c0_7 = arith.constant 0 : index
    %c0_8 = arith.constant 0 : index
    %10 = vector.load %arg4[%c0_7, %c0_8] : memref<2x8xf32, #tpu.memory_space<vmem>>, vector<2x8xf32>
    %c0_9 = arith.constant 0 : index
    %c0_10 = arith.constant 0 : index
    %11 = vector.load %arg5[%c0_9, %c0_10] : memref<8x32xf32, #tpu.memory_space<vmem>>, vector<8x32xf32>
    %cst_11 = arith.constant dense<0.000000e+00> : vector<2x32xf32>
    %12 = tpu.matmul %10, %11, %cst_11 {dimension_numbers = #tpu.dot_dimension_numbers<[1], [0], [0], [1], [0, 0, 1, 1], [], []>} : vector<2x8xf32>, vector<8x32xf32>, vector<2x32xf32> -> vector<2x32xf32>
    %13 = arith.addf %9, %12 : vector<2x32xf32>
    %14 = math.absf %10 : vector<2x8xf32>
    %cst_12 = arith.constant 9.99999997E-7 : f32
    %15 = vector.broadcast %cst_12 : f32 to vector<2x8xf32>
    %16 = arith.addf %14, %15 : vector<2x8xf32>
    %17 = math.log %16 : vector<2x8xf32>
    %c0_13 = arith.constant 0 : index
    %c0_14 = arith.constant 0 : index
    %18 = vector.load %arg6[%c0_13, %c0_14] : memref<8x32xf32, #tpu.memory_space<vmem>>, vector<8x32xf32>
    %cst_15 = arith.constant dense<0.000000e+00> : vector<2x32xf32>
    %19 = tpu.matmul %17, %18, %cst_15 {dimension_numbers = #tpu.dot_dimension_numbers<[1], [0], [0], [1], [0, 0, 1, 1], [], []>} : vector<2x8xf32>, vector<8x32xf32>, vector<2x32xf32> -> vector<2x32xf32>
    %20 = arith.addf %13, %19 : vector<2x32xf32>
    %c0_16 = arith.constant 0 : index
    %c0_17 = arith.constant 0 : index
    %21 = vector.load %arg7[%c0_16, %c0_17] : memref<2x16xf32, #tpu.memory_space<vmem>>, vector<2x16xf32>
    %c0_18 = arith.constant 0 : index
    %c0_19 = arith.constant 0 : index
    %22 = vector.load %arg8[%c0_18, %c0_19] : memref<16x32xf32, #tpu.memory_space<vmem>>, vector<16x32xf32>
    %cst_20 = arith.constant dense<0.000000e+00> : vector<2x32xf32>
    %23 = tpu.matmul %21, %22, %cst_20 {dimension_numbers = #tpu.dot_dimension_numbers<[1], [0], [0], [1], [0, 0, 1, 1], [], []>} : vector<2x16xf32>, vector<16x32xf32>, vector<2x32xf32> -> vector<2x32xf32>
    %24 = arith.addf %20, %23 : vector<2x32xf32>
    %c0_21 = arith.constant 0 : index
    %c0_22 = arith.constant 0 : index
    %25 = vector.load %arg9[%c0_21, %c0_22] : memref<1x32xf32, #tpu.memory_space<vmem>>, vector<1x32xf32>
    %26 = vector.broadcast %25 : vector<1x32xf32> to vector<2x32xf32>
    %27 = arith.addf %24, %26 : vector<2x32xf32>
    %cst_23 = arith.constant 0.000000e+00 : f32
    %28 = vector.broadcast %cst_23 : f32 to vector<2x32xf32>
    %29 = arith.maximumf %27, %28 : vector<2x32xf32>
    %c0_24 = arith.constant 0 : index
    %c0_25 = arith.constant 0 : index
    %30 = vector.load %arg10[%c0_24, %c0_25] : memref<32x16xf32, #tpu.memory_space<vmem>>, vector<32x16xf32>
    %cst_26 = arith.constant dense<0.000000e+00> : vector<2x16xf32>
    %31 = tpu.matmul %29, %30, %cst_26 {dimension_numbers = #tpu.dot_dimension_numbers<[1], [0], [0], [1], [0, 0, 1, 1], [], []>} : vector<2x32xf32>, vector<32x16xf32>, vector<2x16xf32> -> vector<2x16xf32>
    %c0_27 = arith.constant 0 : index
    %c0_28 = arith.constant 0 : index
    %32 = vector.load %arg11[%c0_27, %c0_28] : memref<1x16xf32, #tpu.memory_space<vmem>>, vector<1x16xf32>
    %33 = vector.broadcast %32 : vector<1x16xf32> to vector<2x16xf32>
    %34 = arith.addf %31, %33 : vector<2x16xf32>
    %c0_29 = arith.constant 0 : index
    %c0_30 = arith.constant 0 : index
    %35 = vector.load %arg12[%c0_29, %c0_30] : memref<2x16xf32, #tpu.memory_space<vmem>>, vector<2x16xf32>
    tpu.vector_store %arg12[%c0_29, %c0_30], %34 {strides = array<i32>} : memref<2x16xf32, #tpu.memory_space<vmem>>, vector<2x16xf32>,
    return
  }
  func.func @transform_0(%arg0: i32) -> (i32, i32) {
    %c0_i32 = arith.constant 0 : i32
    %c0_i32_0 = arith.constant 0 : i32
    return %arg0, %c0_i32 : i32, i32
  }
  func.func @transform_1(%arg0: i32) -> (i32, i32) {
    %c0_i32 = arith.constant 0 : i32
    %c0_i32_0 = arith.constant 0 : i32
    %c0_i32_1 = arith.constant 0 : i32
    return %c0_i32, %c0_i32_0 : i32, i32
  }
  func.func @transform_2(%arg0: i32) -> (i32, i32) {
    %c0_i32 = arith.constant 0 : i32
    %c0_i32_0 = arith.constant 0 : i32
    %c0_i32_1 = arith.constant 0 : i32
    return %c0_i32, %c0_i32_0 : i32, i32
  }
  func.func @transform_3(%arg0: i32) -> (i32, i32) {
    %c0_i32 = arith.constant 0 : i32
    %c0_i32_0 = arith.constant 0 : i32
    return %arg0, %c0_i32 : i32, i32
  }
  func.func @transform_4(%arg0: i32) -> (i32, i32) {
    %c0_i32 = arith.constant 0 : i32
    %c0_i32_0 = arith.constant 0 : i32
    %c0_i32_1 = arith.constant 0 : i32
    return %c0_i32, %c0_i32_0 : i32, i32
  }
  func.func @transform_5(%arg0: i32) -> (i32, i32) {
    %c0_i32 = arith.constant 0 : i32
    %c0_i32_0 = arith.constant 0 : i32
    %c0_i32_1 = arith.constant 0 : i32
    return %c0_i32, %c0_i32_0 : i32, i32
  }
  func.func @transform_6(%arg0: i32) -> (i32, i32) {
    %c0_i32 = arith.constant 0 : i32
    %c0_i32_0 = arith.constant 0 : i32
    return %arg0, %c0_i32 : i32, i32
  }
  func.func @transform_7(%arg0: i32) -> (i32, i32) {
    %c0_i32 = arith.constant 0 : i32
    %c0_i32_0 = arith.constant 0 : i32
    %c0_i32_1 = arith.constant 0 : i32
    return %c0_i32, %c0_i32_0 : i32, i32
  }
  func.func @transform_8(%arg0: i32) -> (i32, i32) {
    %c0_i32 = arith.constant 0 : i32
    %c0_i32_0 = arith.constant 0 : i32
    %c0_i32_1 = arith.constant 0 : i32
    return %c0_i32, %c0_i32_0 : i32, i32
  }
  func.func @transform_9(%arg0: i32) -> (i32, i32) {
    %c0_i32 = arith.constant 0 : i32
    %c0_i32_0 = arith.constant 0 : i32
    %c0_i32_1 = arith.constant 0 : i32
    return %c0_i32, %c0_i32_0 : i32, i32
  }
  func.func @transform_10(%arg0: i32) -> (i32, i32) {
    %c0_i32 = arith.constant 0 : i32
    %c0_i32_0 = arith.constant 0 : i32
    %c0_i32_1 = arith.constant 0 : i32
    return %c0_i32, %c0_i32_0 : i32, i32
  }
  func.func @transform_11(%arg0: i32) -> (i32, i32) {
    %c0_i32 = arith.constant 0 : i32
    %c0_i32_0 = arith.constant 0 : i32
    return %arg0, %c0_i32 : i32, i32
  }
}

</mosaic_0001>

<llo_original>
// kernel: tpu_custom_call.1
$region0: #{tpu_custom_call.1}
  #allocation0 [shape = 'u32[]', space=smem, size = 0x4, offset = 0x4, fixed_abs, tag = 'smem constant byte address 0x4 - core index']
  #allocation1 [shape = 'u32[144,128]{1,0:T(1,128)}', space=vmem, size = 0x12000, scoped, tag = 'internal scratch']
  %s0 = inlined_call_operand.hbm [shape: f32[2,8], index: 0, kind: input, shape index: {}]
  %s1 = inlined_call_operand.vmem [shape: f32[8,32], index: 1, kind: input, shape index: {}]
  %s2 = inlined_call_operand.vmem [shape: f32[8,32], index: 2, kind: input, shape index: {}]
  %s3 = inlined_call_operand.vmem [shape: f32[2,8], index: 3, kind: input, shape index: {}]
  %s4 = inlined_call_operand.vmem [shape: f32[8,32], index: 4, kind: input, shape index: {}]
  %s5 = inlined_call_operand.vmem [shape: f32[8,32], index: 5, kind: input, shape index: {}]
  %s6 = inlined_call_operand.vmem [shape: f32[2,16], index: 6, kind: input, shape index: {}]
  %s7 = inlined_call_operand.vmem [shape: f32[16,32], index: 7, kind: input, shape index: {}]
  %s8 = inlined_call_operand.vmem [shape: f32[1,32], index: 8, kind: input, shape index: {}]
  %s9 = inlined_call_operand.vmem [shape: f32[32,16], index: 9, kind: input, shape index: {}]
  %s10 = inlined_call_operand.vmem [shape: f32[1,16], index: 10, kind: input, shape index: {}]
  %s11 = inlined_call_operand.hbm [shape: f32[2,16], index: 11, kind: output, shape index: {}]
  %s12 = sld [smem:[#allocation0]]
  $region58: #{tpu_custom_call.1} parent=0
    _
  %s14 = ssub.s32 1, %s12
  %s15 = scalar_select 0, %s14, %s12
  $region1: #{tpu_custom_call.1} parent=0
    #allocation2 [shape = 'u8[1024]{0}', space=vmem, size = 0x400, scoped, tag = 'input window, operand 0, single buffered']
    #allocation3 [shape = 's32[1]{0}', space=sflag, size = 0x4, scoped, tag = 'scoped memory for tpu_custom_call.1']
    #allocation4 [shape = 's32[1]{0}', space=sflag, size = 0x4, scoped, tag = 'scoped memory for tpu_custom_call.1']
    #allocation5 [shape = 'u8[1024]{0}', space=vmem, size = 0x400, scoped, tag = 'output window, operand 0, single buffered']
    %16 = vsyncpa [#allocation3], 0
    %17 = vsyncpa [#allocation4], 0
    // Predicated region
    $region2: #{tpu_custom_call.1} parent=1 // pred_check
      _
    $region3: #{tpu_custom_call.1} parent=1 // pred_check_branch
      %19 = sbr.rel (0) target = $region5
    $region4: #{tpu_custom_call.1} parent=1 // pred_region
      %s21 = ssub.s32 32, 32
      %22 = vsyncadd [#allocation3], %s21
      %s24 = sshll.u32 [#allocation2], 4
      %s25 = int_to_ptr.vmem [resolvable:$true] %s24
      %27 = dma.hbm_to_vmem [thread:$0]  %s0, 32, %s25, [#allocation3]
    $region5: #{tpu_custom_call.1} parent=1 // pred_fallthru
      _
    // Predicated region
    $region6: #{tpu_custom_call.1} parent=1 // pred_check
      _
    $region7: #{tpu_custom_call.1} parent=1 // pred_check_branch
      %29 = sbr.rel (0) target = $region9
    $region8: #{tpu_custom_call.1} parent=1 // pred_region
      _
    $region9: #{tpu_custom_call.1} parent=1 // pred_fallthru
      _
    // Predicated region
    $region10: #{tpu_custom_call.1} parent=1 // pred_check
      _
    $region11: #{tpu_custom_call.1} parent=1 // pred_check_branch
      %31 = sbr.rel (0) target = $region13
    $region12: #{tpu_custom_call.1} parent=1 // pred_region
      _
    $region13: #{tpu_custom_call.1} parent=1 // pred_fallthru
      _
    // Predicated region
    $region14: #{tpu_custom_call.1} parent=1 // pred_check
      _
    $region15: #{tpu_custom_call.1} parent=1 // pred_check_branch
      %33 = sbr.rel (0) target = $region17
    $region16: #{tpu_custom_call.1} parent=1 // pred_region
      _
    $region17: #{tpu_custom_call.1} parent=1 // pred_fallthru
      _
    // Predicated region
    $region18: #{tpu_custom_call.1} parent=1 // pred_check
      _
    $region19: #{tpu_custom_call.1} parent=1 // pred_check_branch
      %35 = sbr.rel (0) target = $region21
    $region20: #{tpu_custom_call.1} parent=1 // pred_region
      _
    $region21: #{tpu_custom_call.1} parent=1 // pred_fallthru
      _
    // Predicated region
    $region22: #{tpu_custom_call.1} parent=1 // pred_check
      _
    $region23: #{tpu_custom_call.1} parent=1 // pred_check_branch
      %37 = sbr.rel (0) target = $region25
    $region24: #{tpu_custom_call.1} parent=1 // pred_region
      _
    $region25: #{tpu_custom_call.1} parent=1 // pred_fallthru
      _
    // Predicated region
    $region26: #{tpu_custom_call.1} parent=1 // pred_check
      _
    $region27: #{tpu_custom_call.1} parent=1 // pred_check_branch
      %39 = sbr.rel (0) target = $region29
    $region28: #{tpu_custom_call.1} parent=1 // pred_region
      _
    $region29: #{tpu_custom_call.1} parent=1 // pred_fallthru
      _
    // Predicated region
    $region30: #{tpu_custom_call.1} parent=1 // pred_check
      _
    $region31: #{tpu_custom_call.1} parent=1 // pred_check_branch
      %41 = sbr.rel (0) target = $region33
    $region32: #{tpu_custom_call.1} parent=1 // pred_region
      _
    $region33: #{tpu_custom_call.1} parent=1 // pred_fallthru
      _
    // Predicated region
    $region34: #{tpu_custom_call.1} parent=1 // pred_check
      _
    $region35: #{tpu_custom_call.1} parent=1 // pred_check_branch
      %43 = sbr.rel (0) target = $region37
    $region36: #{tpu_custom_call.1} parent=1 // pred_region
      _
    $region37: #{tpu_custom_call.1} parent=1 // pred_fallthru
      _
    // Predicated region
    $region38: #{tpu_custom_call.1} parent=1 // pred_check
      _
    $region39: #{tpu_custom_call.1} parent=1 // pred_check_branch
      %45 = sbr.rel (0) target = $region41
    $region40: #{tpu_custom_call.1} parent=1 // pred_region
      _
    $region41: #{tpu_custom_call.1} parent=1 // pred_fallthru
      _
    // Predicated region
    $region42: #{tpu_custom_call.1} parent=1 // pred_check
      _
    $region43: #{tpu_custom_call.1} parent=1 // pred_check_branch
      %47 = sbr.rel (0) target = $region45
    $region44: #{tpu_custom_call.1} parent=1 // pred_region
      _
    $region45: #{tpu_custom_call.1} parent=1 // pred_fallthru
      _
    // Predicated region
    $region46: #{tpu_custom_call.1} parent=1 // pred_check
      _
    $region47: #{tpu_custom_call.1} parent=1 // pred_check_branch
      %49 = sbr.rel (0) target = $region49
    $region48: #{tpu_custom_call.1} parent=1 // pred_region
      %50 = dma.done [#allocation3], 32
    $region49: #{tpu_custom_call.1} parent=1 // pred_fallthru
      _
    %v51 = vld [vmem:[#allocation2] sm:$0x3]
    %v52 = vld [vmem:[%s1] sm:$0xff]
    %v53 = vand.u32 2147483647, %v51
    %v54 = vadd.f32 %v53, 1e-06
    %v55 = vlog2.pop %v54
    %v56 = vmul.f32 %v55, 0.6931472
    %v57 = vld [vmem:[%s2] sm:$0xff]
    %vm58 = vcmask 64512
    %v60 = vsel %vm58, %v56, 0
    %62 = vmatprep.subr.mxu0 0.0
    %63 = vmatpush1.msra.mxu0 %v57
    %64 = vmatprep.subr.mxu0 0.0
    %65 = vmatpush1.msra.mxu0 0.0
    %66 = vmatprep.subr.mxu0 0.0
    %67 = vmatpush1.msra.mxu0 0.0
    %68 = vmatprep.subr.mxu0 0.0
    %69 = vmatpush1.msra.mxu0 0.0
    %70 = vmatprep.subr.mxu0 0.0
    %71 = vmatpush1.msra.mxu0 0.0
    %72 = vmatprep.subr.mxu0 0.0
    %73 = vmatpush1.msra.mxu0 0.0
    %74 = vmatprep.subr.mxu0 0.0
    %75 = vmatpush1.msra.mxu0 0.0
    %76 = vmatprep.subr.mxu0 0.0
    %77 = vmatpush1.msra.mxu0 0.0
    %78 = vmatprep.subr.mxu0 0.0
    %79 = vmatpush1.msra.mxu0 0.0
    %80 = vmatprep.subr.mxu0 0.0
    %81 = vmatpush1.msra.mxu0 0.0
    %82 = vmatprep.subr.mxu0 0.0
    %83 = vmatpush1.msra.mxu0 0.0
    %84 = vmatprep.subr.mxu0 0.0
    %85 = vmatpush1.msra.mxu0 0.0
    %86 = vmatprep.subr.mxu0 0.0
    %87 = vmatpush1.msra.mxu0 0.0
    %88 = vmatprep.subr.mxu0 0.0
    %89 = vmatpush1.msra.mxu0 0.0
    %90 = vmatprep.subr.mxu0 0.0
    %91 = vmatpush1.msra.mxu0 0.0
    %92 = vmatprep.subr.mxu0 0.0
    %93 = vmatpush1.msra.mxu0 0.0
    %94 = vmatprep.subr.mxu0 0.0
    %95 = vmatpush1.msra.mxu0 0.0
    %96 = vmatprep.subr.mxu0 0.0
    %97 = vmatpush1.msra.mxu0 0.0
    %98 = vmatprep.subr.mxu0 0.0
    %99 = vmatpush1.msra.mxu0 0.0
    %100 = vmatprep.subr.mxu0 0.0
    %101 = vmatpush1.msra.mxu0 0.0
    %102 = vmatprep.subr.mxu0 0.0
    %103 = vmatpush1.msra.mxu0 0.0
    %104 = vmatprep.subr.mxu0 0.0
    %105 = vmatpush1.msra.mxu0 0.0
    %106 = vmatprep.subr.mxu0 0.0
    %107 = vmatpush1.msra.mxu0 0.0
    %108 = vmatprep.subr.mxu0 0.0
    %109 = vmatpush1.msra.mxu0 0.0
    %110 = vmatprep.subr.mxu0 0.0
    %111 = vmatpush1.msra.mxu0 0.0
    %112 = vmatprep.subr.mxu0 0.0
    %113 = vmatpush1.msra.mxu0 0.0
    %114 = vmatprep.subr.mxu0 0.0
    %115 = vmatpush1.msra.mxu0 0.0
    %116 = vmatprep.subr.mxu0 0.0
    %117 = vmatpush1.msra.mxu0 0.0
    %118 = vmatprep.subr.mxu0 0.0
    %119 = vmatpush1.msra.mxu0 0.0
    %120 = vmatprep.subr.mxu0 0.0
    %121 = vmatpush1.msra.mxu0 0.0
    %122 = vmatprep.subr.mxu0 0.0
    %123 = vmatpush1.msra.mxu0 0.0
    %124 = vmatprep.subr.mxu0 0.0
    %125 = vmatpush1.msra.mxu0 0.0
    %126 = vmatprep.mubr.f32.mxu0 0.0
    %127 = vmatmul.mubr.f32.gmra.mrb[0].mxu0 %v60
    %v128 = vpop.f32.mrb[0].mxu0
    %v129 = vadd.f32 0.0, %v128
    %v130 = vpop.f32.mrb[0].mxu0
    %131 = vdwg.mxu0
    %v133 = vsel %vm58, %v51, 0
    %135 = vmatprep.subr.mxu0 0.0
    %136 = vmatpush1.msra.mxu0 %v52
    %137 = vmatprep.subr.mxu0 0.0
    %138 = vmatpush1.msra.mxu0 0.0
    %139 = vmatprep.subr.mxu0 0.0
    %140 = vmatpush1.msra.mxu0 0.0
    %141 = vmatprep.subr.mxu0 0.0
    %142 = vmatpush1.msra.mxu0 0.0
    %143 = vmatprep.subr.mxu0 0.0
    %144 = vmatpush1.msra.mxu0 0.0
    %145 = vmatprep.subr.mxu0 0.0
    %146 = vmatpush1.msra.mxu0 0.0
    %147 = vmatprep.subr.mxu0 0.0
    %148 = vmatpush1.msra.mxu0 0.0
    %149 = vmatprep.subr.mxu0 0.0
    %150 = vmatpush1.msra.mxu0 0.0
    %151 = vmatprep.subr.mxu0 0.0
    %152 = vmatpush1.msra.mxu0 0.0
    %153 = vmatprep.subr.mxu0 0.0
    %154 = vmatpush1.msra.mxu0 0.0
    %155 = vmatprep.subr.mxu0 0.0
    %156 = vmatpush1.msra.mxu0 0.0
    %157 = vmatprep.subr.mxu0 0.0
    %158 = vmatpush1.msra.mxu0 0.0
    %159 = vmatprep.subr.mxu0 0.0
    %160 = vmatpush1.msra.mxu0 0.0
    %161 = vmatprep.subr.mxu0 0.0
    %162 = vmatpush1.msra.mxu0 0.0
    %163 = vmatprep.subr.mxu0 0.0
    %164 = vmatpush1.msra.mxu0 0.0
    %165 = vmatprep.subr.mxu0 0.0
    %166 = vmatpush1.msra.mxu0 0.0
    %167 = vmatprep.subr.mxu0 0.0
    %168 = vmatpush1.msra.mxu0 0.0
    %169 = vmatprep.subr.mxu0 0.0
    %170 = vmatpush1.msra.mxu0 0.0
    %171 = vmatprep.subr.mxu0 0.0
    %172 = vmatpush1.msra.mxu0 0.0
    %173 = vmatprep.subr.mxu0 0.0
    %174 = vmatpush1.msra.mxu0 0.0
    %175 = vmatprep.subr.mxu0 0.0
    %176 = vmatpush1.msra.mxu0 0.0
    %177 = vmatprep.subr.mxu0 0.0
    %178 = vmatpush1.msra.mxu0 0.0
    %179 = vmatprep.subr.mxu0 0.0
    %180 = vmatpush1.msra.mxu0 0.0
    %181 = vmatprep.subr.mxu0 0.0
    %182 = vmatpush1.msra.mxu0 0.0
    %183 = vmatprep.subr.mxu0 0.0
    %184 = vmatpush1.msra.mxu0 0.0
    %185 = vmatprep.subr.mxu0 0.0
    %186 = vmatpush1.msra.mxu0 0.0
    %187 = vmatprep.subr.mxu0 0.0
    %188 = vmatpush1.msra.mxu0 0.0
    %189 = vmatprep.subr.mxu0 0.0
    %190 = vmatpush1.msra.mxu0 0.0
    %191 = vmatprep.subr.mxu0 0.0
    %192 = vmatpush1.msra.mxu0 0.0
    %193 = vmatprep.subr.mxu0 0.0
    %194 = vmatpush1.msra.mxu0 0.0
    %195 = vmatprep.subr.mxu0 0.0
    %196 = vmatpush1.msra.mxu0 0.0
    %197 = vmatprep.subr.mxu0 0.0
    %198 = vmatpush1.msra.mxu0 0.0
    %199 = vmatprep.mubr.f32.mxu0 0.0
    %200 = vmatmul.mubr.f32.gmra.mrb[0].mxu0 %v133
    %v201 = vpop.f32.mrb[0].mxu0
    %v202 = vadd.f32 %v129, %v201
    %v203 = vpop.f32.mrb[0].mxu0
    %204 = vdwg.mxu0
    %v205 = vld [vmem:[%s3] sm:$0x3]
    %v206 = vld [vmem:[%s4] sm:$0xff]
    %v208 = vsel %vm58, %v205, 0
    %210 = vmatprep.subr.mxu0 0.0
    %211 = vmatpush1.msra.mxu0 %v206
    %212 = vmatprep.subr.mxu0 0.0
    %213 = vmatpush1.msra.mxu0 0.0
    %214 = vmatprep.subr.mxu0 0.0
    %215 = vmatpush1.msra.mxu0 0.0
    %216 = vmatprep.subr.mxu0 0.0
    %217 = vmatpush1.msra.mxu0 0.0
    %218 = vmatprep.subr.mxu0 0.0
    %219 = vmatpush1.msra.mxu0 0.0
    %220 = vmatprep.subr.mxu0 0.0
    %221 = vmatpush1.msra.mxu0 0.0
    %222 = vmatprep.subr.mxu0 0.0
    %223 = vmatpush1.msra.mxu0 0.0
    %224 = vmatprep.subr.mxu0 0.0
    %225 = vmatpush1.msra.mxu0 0.0
    %226 = vmatprep.subr.mxu0 0.0
    %227 = vmatpush1.msra.mxu0 0.0
    %228 = vmatprep.subr.mxu0 0.0
    %229 = vmatpush1.msra.mxu0 0.0
    %230 = vmatprep.subr.mxu0 0.0
    %231 = vmatpush1.msra.mxu0 0.0
    %232 = vmatprep.subr.mxu0 0.0
    %233 = vmatpush1.msra.mxu0 0.0
    %234 = vmatprep.subr.mxu0 0.0
    %235 = vmatpush1.msra.mxu0 0.0
    %236 = vmatprep.subr.mxu0 0.0
    %237 = vmatpush1.msra.mxu0 0.0
    %238 = vmatprep.subr.mxu0 0.0
    %239 = vmatpush1.msra.mxu0 0.0
    %240 = vmatprep.subr.mxu0 0.0
    %241 = vmatpush1.msra.mxu0 0.0
    %242 = vmatprep.subr.mxu0 0.0
    %243 = vmatpush1.msra.mxu0 0.0
    %244 = vmatprep.subr.mxu0 0.0
    %245 = vmatpush1.msra.mxu0 0.0
    %246 = vmatprep.subr.mxu0 0.0
    %247 = vmatpush1.msra.mxu0 0.0
    %248 = vmatprep.subr.mxu0 0.0
    %249 = vmatpush1.msra.mxu0 0.0
    %250 = vmatprep.subr.mxu0 0.0
    %251 = vmatpush1.msra.mxu0 0.0
    %252 = vmatprep.subr.mxu0 0.0
    %253 = vmatpush1.msra.mxu0 0.0
    %254 = vmatprep.subr.mxu0 0.0
    %255 = vmatpush1.msra.mxu0 0.0
    %256 = vmatprep.subr.mxu0 0.0
    %257 = vmatpush1.msra.mxu0 0.0
    %258 = vmatprep.subr.mxu0 0.0
    %259 = vmatpush1.msra.mxu0 0.0
    %260 = vmatprep.subr.mxu0 0.0
    %261 = vmatpush1.msra.mxu0 0.0
    %262 = vmatprep.subr.mxu0 0.0
    %263 = vmatpush1.msra.mxu0 0.0
    %264 = vmatprep.subr.mxu0 0.0
    %265 = vmatpush1.msra.mxu0 0.0
    %266 = vmatprep.subr.mxu0 0.0
    %267 = vmatpush1.msra.mxu0 0.0
    %268 = vmatprep.subr.mxu0 0.0
    %269 = vmatpush1.msra.mxu0 0.0
    %270 = vmatprep.subr.mxu0 0.0
    %271 = vmatpush1.msra.mxu0 0.0
    %272 = vmatprep.subr.mxu0 0.0
    %273 = vmatpush1.msra.mxu0 0.0
    %274 = vmatprep.mubr.f32.mxu0 0.0
    %275 = vmatmul.mubr.f32.gmra.mrb[0].mxu0 %v208
    %v276 = vpop.f32.mrb[0].mxu0
    %v277 = vadd.f32 0.0, %v276
    %v278 = vpop.f32.mrb[0].mxu0
    %279 = vdwg.mxu0
    %v280 = vadd.f32 %v202, %v277
    %v281 = vand.u32 2147483647, %v205
    %v282 = vadd.f32 %v281, 1e-06
    %v283 = vlog2.pop %v282
    %v284 = vmul.f32 %v283, 0.6931472
    %v285 = vld [vmem:[%s5] sm:$0xff]
    %v287 = vsel %vm58, %v284, 0
    %289 = vmatprep.subr.mxu0 0.0
    %290 = vmatpush1.msra.mxu0 %v285
    %291 = vmatprep.subr.mxu0 0.0
    %292 = vmatpush1.msra.mxu0 0.0
    %293 = vmatprep.subr.mxu0 0.0
    %294 = vmatpush1.msra.mxu0 0.0
    %295 = vmatprep.subr.mxu0 0.0
    %296 = vmatpush1.msra.mxu0 0.0
    %297 = vmatprep.subr.mxu0 0.0
    %298 = vmatpush1.msra.mxu0 0.0
    %299 = vmatprep.subr.mxu0 0.0
    %300 = vmatpush1.msra.mxu0 0.0
    %301 = vmatprep.subr.mxu0 0.0
    %302 = vmatpush1.msra.mxu0 0.0
    %303 = vmatprep.subr.mxu0 0.0
    %304 = vmatpush1.msra.mxu0 0.0
    %305 = vmatprep.subr.mxu0 0.0
    %306 = vmatpush1.msra.mxu0 0.0
    %307 = vmatprep.subr.mxu0 0.0
    %308 = vmatpush1.msra.mxu0 0.0
    %309 = vmatprep.subr.mxu0 0.0
    %310 = vmatpush1.msra.mxu0 0.0
    %311 = vmatprep.subr.mxu0 0.0
    %312 = vmatpush1.msra.mxu0 0.0
    %313 = vmatprep.subr.mxu0 0.0
    %314 = vmatpush1.msra.mxu0 0.0
    %315 = vmatprep.subr.mxu0 0.0
    %316 = vmatpush1.msra.mxu0 0.0
    %317 = vmatprep.subr.mxu0 0.0
    %318 = vmatpush1.msra.mxu0 0.0
    %319 = vmatprep.subr.mxu0 0.0
    %320 = vmatpush1.msra.mxu0 0.0
    %321 = vmatprep.subr.mxu0 0.0
    %322 = vmatpush1.msra.mxu0 0.0
    %323 = vmatprep.subr.mxu0 0.0
    %324 = vmatpush1.msra.mxu0 0.0
    %325 = vmatprep.subr.mxu0 0.0
    %326 = vmatpush1.msra.mxu0 0.0
    %327 = vmatprep.subr.mxu0 0.0
    %328 = vmatpush1.msra.mxu0 0.0
    %329 = vmatprep.subr.mxu0 0.0
    %330 = vmatpush1.msra.mxu0 0.0
    %331 = vmatprep.subr.mxu0 0.0
    %332 = vmatpush1.msra.mxu0 0.0
    %333 = vmatprep.subr.mxu0 0.0
    %334 = vmatpush1.msra.mxu0 0.0
    %335 = vmatprep.subr.mxu0 0.0
    %336 = vmatpush1.msra.mxu0 0.0
    %337 = vmatprep.subr.mxu0 0.0
    %338 = vmatpush1.msra.mxu0 0.0
    %339 = vmatprep.subr.mxu0 0.0
    %340 = vmatpush1.msra.mxu0 0.0
    %341 = vmatprep.subr.mxu0 0.0
    %342 = vmatpush1.msra.mxu0 0.0
    %343 = vmatprep.subr.mxu0 0.0
    %344 = vmatpush1.msra.mxu0 0.0
    %345 = vmatprep.subr.mxu0 0.0
    %346 = vmatpush1.msra.mxu0 0.0
    %347 = vmatprep.subr.mxu0 0.0
    %348 = vmatpush1.msra.mxu0 0.0
    %349 = vmatprep.subr.mxu0 0.0
    %350 = vmatpush1.msra.mxu0 0.0
    %351 = vmatprep.subr.mxu0 0.0
    %352 = vmatpush1.msra.mxu0 0.0
    %353 = vmatprep.mubr.f32.mxu0 0.0
    %354 = vmatmul.mubr.f32.gmra.mrb[0].mxu0 %v287
    %v355 = vpop.f32.mrb[0].mxu0
    %v356 = vadd.f32 0.0, %v355
    %v357 = vpop.f32.mrb[0].mxu0
    %358 = vdwg.mxu0
    %v359 = vadd.f32 %v280, %v356
    %v360 = vld [vmem:[%s6] sm:$0x3]
    %v361 = vld [vmem:[%s7] sm:$0xff]
    %v362 = vld [vmem:[%s7 + $0x8] sm:$0xff]
    %vm363 = vcmask 130048
    %v365 = vsel %vm363, %v360, 0
    %367 = vmatprep.subr.mxu0 0.0
    %368 = vmatpush1.msra.mxu0 %v361
    %369 = vmatprep.subr.mxu0 0.0
    %370 = vmatpush1.msra.mxu0 %v362
    %371 = vmatprep.subr.mxu0 0.0
    %372 = vmatpush1.msra.mxu0 0.0
    %373 = vmatprep.subr.mxu0 0.0
    %374 = vmatpush1.msra.mxu0 0.0
    %375 = vmatprep.subr.mxu0 0.0
    %376 = vmatpush1.msra.mxu0 0.0
    %377 = vmatprep.subr.mxu0 0.0
    %378 = vmatpush1.msra.mxu0 0.0
    %379 = vmatprep.subr.mxu0 0.0
    %380 = vmatpush1.msra.mxu0 0.0
    %381 = vmatprep.subr.mxu0 0.0
    %382 = vmatpush1.msra.mxu0 0.0
    %383 = vmatprep.subr.mxu0 0.0
    %384 = vmatpush1.msra.mxu0 0.0
    %385 = vmatprep.subr.mxu0 0.0
    %386 = vmatpush1.msra.mxu0 0.0
    %387 = vmatprep.subr.mxu0 0.0
    %388 = vmatpush1.msra.mxu0 0.0
    %389 = vmatprep.subr.mxu0 0.0
    %390 = vmatpush1.msra.mxu0 0.0
    %391 = vmatprep.subr.mxu0 0.0
    %392 = vmatpush1.msra.mxu0 0.0
    %393 = vmatprep.subr.mxu0 0.0
    %394 = vmatpush1.msra.mxu0 0.0
    %395 = vmatprep.subr.mxu0 0.0
    %396 = vmatpush1.msra.mxu0 0.0
    %397 = vmatprep.subr.mxu0 0.0
    %398 = vmatpush1.msra.mxu0 0.0
    %399 = vmatprep.subr.mxu0 0.0
    %400 = vmatpush1.msra.mxu0 0.0
    %401 = vmatprep.subr.mxu0 0.0
    %402 = vmatpush1.msra.mxu0 0.0
    %403 = vmatprep.subr.mxu0 0.0
    %404 = vmatpush1.msra.mxu0 0.0
    %405 = vmatprep.subr.mxu0 0.0
    %406 = vmatpush1.msra.mxu0 0.0
    %407 = vmatprep.subr.mxu0 0.0
    %408 = vmatpush1.msra.mxu0 0.0
    %409 = vmatprep.subr.mxu0 0.0
    %410 = vmatpush1.msra.mxu0 0.0
    %411 = vmatprep.subr.mxu0 0.0
    %412 = vmatpush1.msra.mxu0 0.0
    %413 = vmatprep.subr.mxu0 0.0
    %414 = vmatpush1.msra.mxu0 0.0
    %415 = vmatprep.subr.mxu0 0.0
    %416 = vmatpush1.msra.mxu0 0.0
    %417 = vmatprep.subr.mxu0 0.0
    %418 = vmatpush1.msra.mxu0 0.0
    %419 = vmatprep.subr.mxu0 0.0
    %420 = vmatpush1.msra.mxu0 0.0
    %421 = vmatprep.subr.mxu0 0.0
    %422 = vmatpush1.msra.mxu0 0.0
    %423 = vmatprep.subr.mxu0 0.0
    %424 = vmatpush1.msra.mxu0 0.0
    %425 = vmatprep.subr.mxu0 0.0
    %426 = vmatpush1.msra.mxu0 0.0
    %427 = vmatprep.subr.mxu0 0.0
    %428 = vmatpush1.msra.mxu0 0.0
    %429 = vmatprep.subr.mxu0 0.0
    %430 = vmatpush1.msra.mxu0 0.0
    %431 = vmatprep.mubr.f32.mxu0 0.0
    %432 = vmatmul.mubr.f32.gmra.mrb[0].mxu0 %v365
    %v433 = vpop.f32.mrb[0].mxu0
    %v434 = vadd.f32 0.0, %v433
    %v435 = vpop.f32.mrb[0].mxu0
    %436 = vdwg.mxu0
    %v437 = vadd.f32 %v359, %v434
    %v438 = vld [vmem:[%s8] sm:$0x1]
    %v440 = vlaneseq
    %v441 = vshrl.u32 %v440, 7
    %v442 = vsub.s32 0, %v441
    %v443 = vrot.slane %v438, %v442
    %v445 = vadd.f32 %v437, %v443
    %v446 = vmax.f32 %v445, 0.0
    %v447 = vld [vmem:[%s9] sm:$0xff]
    %v448 = vld [vmem:[%s9 + $0x8] sm:$0xff]
    %v449 = vld [vmem:[%s9 + $0x10] sm:$0xff]
    %v450 = vld [vmem:[%s9 + $0x18] sm:$0xff]
    %v451 = vld [vmem:[%s10] sm:$0x1]
    %v453 = vlaneseq
    %v454 = vshrl.u32 %v453, 7
    %v455 = vsub.s32 0, %v454
    %v456 = vrot.slane %v451, %v455
    %vm458 = vcmask 261120
    %v460 = vsel %vm458, %v446, 0
    %462 = vmatprep.subr.mxu0 0.0
    %463 = vmatpush1.msra.mxu0 %v447
    %464 = vmatprep.subr.mxu0 0.0
    %465 = vmatpush1.msra.mxu0 %v448
    %466 = vmatprep.subr.mxu0 0.0
    %467 = vmatpush1.msra.mxu0 %v449
    %468 = vmatprep.subr.mxu0 0.0
    %469 = vmatpush1.msra.mxu0 %v450
    %470 = vmatprep.subr.mxu0 0.0
    %471 = vmatpush1.msra.mxu0 0.0
    %472 = vmatprep.subr.mxu0 0.0
    %473 = vmatpush1.msra.mxu0 0.0
    %474 = vmatprep.subr.mxu0 0.0
    %475 = vmatpush1.msra.mxu0 0.0
    %476 = vmatprep.subr.mxu0 0.0
    %477 = vmatpush1.msra.mxu0 0.0
    %478 = vmatprep.subr.mxu0 0.0
    %479 = vmatpush1.msra.mxu0 0.0
    %480 = vmatprep.subr.mxu0 0.0
    %481 = vmatpush1.msra.mxu0 0.0
    %482 = vmatprep.subr.mxu0 0.0
    %483 = vmatpush1.msra.mxu0 0.0
    %484 = vmatprep.subr.mxu0 0.0
    %485 = vmatpush1.msra.mxu0 0.0
    %486 = vmatprep.subr.mxu0 0.0
    %487 = vmatpush1.msra.mxu0 0.0
    %488 = vmatprep.subr.mxu0 0.0
    %489 = vmatpush1.msra.mxu0 0.0
    %490 = vmatprep.subr.mxu0 0.0
    %491 = vmatpush1.msra.mxu0 0.0
    %492 = vmatprep.subr.mxu0 0.0
    %493 = vmatpush1.msra.mxu0 0.0
    %494 = vmatprep.subr.mxu0 0.0
    %495 = vmatpush1.msra.mxu0 0.0
    %496 = vmatprep.subr.mxu0 0.0
    %497 = vmatpush1.msra.mxu0 0.0
    %498 = vmatprep.subr.mxu0 0.0
    %499 = vmatpush1.msra.mxu0 0.0
    %500 = vmatprep.subr.mxu0 0.0
    %501 = vmatpush1.msra.mxu0 0.0
    %502 = vmatprep.subr.mxu0 0.0
    %503 = vmatpush1.msra.mxu0 0.0
    %504 = vmatprep.subr.mxu0 0.0
    %505 = vmatpush1.msra.mxu0 0.0
    %506 = vmatprep.subr.mxu0 0.0
    %507 = vmatpush1.msra.mxu0 0.0
    %508 = vmatprep.subr.mxu0 0.0
    %509 = vmatpush1.msra.mxu0 0.0
    %510 = vmatprep.subr.mxu0 0.0
    %511 = vmatpush1.msra.mxu0 0.0
    %512 = vmatprep.subr.mxu0 0.0
    %513 = vmatpush1.msra.mxu0 0.0
    %514 = vmatprep.subr.mxu0 0.0
    %515 = vmatpush1.msra.mxu0 0.0
    %516 = vmatprep.subr.mxu0 0.0
    %517 = vmatpush1.msra.mxu0 0.0
    %518 = vmatprep.subr.mxu0 0.0
    %519 = vmatpush1.msra.mxu0 0.0
    %520 = vmatprep.subr.mxu0 0.0
    %521 = vmatpush1.msra.mxu0 0.0
    %522 = vmatprep.subr.mxu0 0.0
    %523 = vmatpush1.msra.mxu0 0.0
    %524 = vmatprep.subr.mxu0 0.0
    %525 = vmatpush1.msra.mxu0 0.0
    %526 = vmatprep.mubr.f32.mxu0 0.0
    %527 = vmatmul.mubr.f32.gmra.mrb[0].mxu0 %v460
    %v528 = vpop.f32.mrb[0].mxu0
    %v529 = vadd.f32 %v456, %v528
    %v530 = vpop.f32.mrb[0].mxu0
    %531 = vdwg.mxu0
    %vm532 = vcmask 123904
    %533 = vst.msk [vmem:[#allocation5] sm:$0x3] %vm532, %v529
    // Predicated region
    $region50: #{tpu_custom_call.1} parent=1 // pred_check
      _
    $region51: #{tpu_custom_call.1} parent=1 // pred_check_branch
      %535 = sbr.rel (0) target = $region53
    $region52: #{tpu_custom_call.1} parent=1 // pred_region
      %s537 = ssub.s32 32, 32
      %538 = vsyncadd [#allocation4], %s537
      %s540 = sshll.u32 [#allocation5], 4
      %s541 = int_to_ptr.vmem [resolvable:$true] %s540
      %543 = dma.vmem_to_hbm [thread:$0]  %s541, 32, %s11, [#allocation4]
    $region53: #{tpu_custom_call.1} parent=1 // pred_fallthru
      _
    // Predicated region
    $region54: #{tpu_custom_call.1} parent=1 // pred_check
      _
    $region55: #{tpu_custom_call.1} parent=1 // pred_check_branch
      %545 = sbr.rel (0) target = $region57
    $region56: #{tpu_custom_call.1} parent=1 // pred_region
      %546 = dma.done [#allocation4], 32
    $region57: #{tpu_custom_call.1} parent=1 // pred_fallthru
      _
    %547 = vsyncpa [#allocation3], 1
    %548 = vsyncpa [#allocation4], 1

</llo_original>
